<compile_context>
chip_gen: v5e
topology: v5e:2x2
jax: 0.10.0
libtpu: 0.0.40
codegen_flags: <defaults>
</compile_context>

<pallas_src>
import jax
import jax.numpy as jnp
from jax.experimental import pallas as pl
from jax.experimental.pallas import tpu as pltpu


_LANE_CANDIDATES = (16384, 8192, 4096, 2048, 1024, 512, 256, 128)


def _chip_tuning():
    """Per-generation tiling policy, chosen at trace time.

    Returns (target_tile_bytes, vmem_limit_bytes, prefer_even_blocks, native_lowp_ok).
    """
    kind = ""
    try:
        kind = jax.devices()[0].device_kind.lower()
    except Exception:
        pass
    if "7" in kind:
        # v7x: ~3.2 TB/s HBM shared by 2 TCs, only 64 MiB physical VMEM.
        # 4 MiB blocks -> 16 MiB live (double-buffered in+out); even block
        # counts keep both TensorCores load-balanced.
        return 4 << 20, 32 << 20, True, True
    if "v6" in kind:
        # v6e: ~1.3-1.4 TB/s HBM; 4 MiB blocks fit easily under the 32 MiB
        # scoped default and push per-step overhead below ~10%.
        return 4 << 20, 32 << 20, False, True
    if "v5" in kind:
        # v5-class: 16 MiB scoped default, ~0.8 TB/s HBM.  2 MiB blocks
        # (8 MiB live) already make step overhead negligible; raise the scoped
        # limit slightly for headroom (physical VMEM is 128 MiB -> safe).
        # No bf16 VPU -> keep the f32 multiply path.
        return 2 << 20, 24 << 20, False, False
    # Unknown / older chip: conservative defaults.
    return 2 << 20, 24 << 20, False, False


def _pick_lane(n, sub):
    """Widest lane-dense width dividing n.  First pass also requires the row
    count to be a multiple of the sublane tile (full vreg utilization); second
    pass only requires divisibility; None -> ragged element count."""
    for cand in _LANE_CANDIDATES:
        if n % (cand * sub) == 0:
            return cand
    for cand in _LANE_CANDIDATES:
        if n % cand == 0:
            return cand
    return None


def _make_mul_kernel(native):
    if native:
        # Sub-32-bit float on v6e/v7x: one scalar cast, multiply in the native
        # dtype (no bf16->f32 unpack / repack of the whole tile).
        def _mul_kernel(factor_ref, x_ref, o_ref):
            f = factor_ref[0, 0].astype(o_ref.dtype)
            o_ref[...] = (x_ref[...] * f).astype(o_ref.dtype)
    else:
        def _mul_kernel(factor_ref, x_ref, o_ref):
            f = factor_ref[0, 0]                      # f32 scalar from SMEM
            o_ref[...] = (x_ref[...] * f).astype(o_ref.dtype)
    return _mul_kernel


def _mul_pallas_2d(x2d, factor_f32, *, donate_x=False):
    """x2d: (rows, lane) with lane a multiple of 128.  Returns x2d * factor."""
    rows, lane = x2d.shape
    dtype = x2d.dtype
    itemsize = jnp.dtype(dtype).itemsize
    sub = max(8, 32 // itemsize)          # min sublane tile: f32->8, bf16->16, int8->32

    tile_bytes, vmem_limit, prefer_even, native_lowp = _chip_tuning()
    native = bool(native_lowp and itemsize < 4 and jnp.issubdtype(dtype, jnp.floating))

    # Rows per block: largest multiple of the sublane tile keeping one block at
    # <= the per-generation byte target.
    tr = (tile_bytes // (lane * itemsize)) // sub * sub
    tr = max(sub, tr)
    if tr >= rows:
        tr = rows                          # single full-extent block (always legal)
    num_blocks = pl.cdiv(rows, tr)

    # v7x: prefer an even block count so both TensorCores get equal work.
    if prefer_even and num_blocks > 1 and num_blocks % 2 == 1:
        tr2 = -(-rows // (num_blocks + 1))         # ceil(rows / (num_blocks+1))
        tr2 = -(-tr2 // sub) * sub                 # round up to sublane multiple
        if sub <= tr2 < rows and pl.cdiv(rows, tr2) % 2 == 0:
            tr = tr2
            num_blocks = pl.cdiv(rows, tr)

    factor_smem = jnp.asarray(factor_f32, dtype=jnp.float32).reshape(1, 1)
    n_bytes = rows * lane * itemsize

    return pl.pallas_call(
        _make_mul_kernel(native),
        out_shape=jax.ShapeDtypeStruct((rows, lane), dtype),
        grid=(num_blocks,),
        in_specs=[
            pl.BlockSpec(memory_space=pltpu.SMEM),        # scalar factor (f32, SMEM)
            pl.BlockSpec((tr, lane), lambda i: (i, 0)),   # x tile
        ],
        out_specs=pl.BlockSpec((tr, lane), lambda i: (i, 0)),
        # Aliasing x -> out only saves an HBM allocation (footprint), not BW.
        input_output_aliases=({1: 0} if donate_x else {}),
        compiler_params=pltpu.CompilerParams(
            dimension_semantics=("parallel",),            # lets v7x use both TCs
            vmem_limit_bytes=vmem_limit,
        ),
        cost_estimate=pl.CostEstimate(
            flops=rows * lane, transcendentals=0, bytes_accessed=2 * n_bytes),
    )(factor_smem, x2d)


def multiplication_forward(x: jax.Array, factor: jax.Array, *, donate_x: bool = False) -> jax.Array:
    """Computes x * factor (scalar nn.Parameter), matching MultiplicationInverse.forward."""
    orig_shape = x.shape
    dtype = x.dtype
    n = int(x.size)
    if n == 0:
        return x

    factor_f32 = jnp.asarray(factor, dtype=jnp.float32).reshape(-1)[0]
    itemsize = jnp.dtype(dtype).itemsize
    sub = max(8, 32 // itemsize)
    flat = x.reshape(-1)                  # free view; no HBM traffic

    lane = _pick_lane(n, sub)
    if lane is not None:
        out2d = _mul_pallas_2d(flat.reshape(n // lane, lane), factor_f32,
                               donate_x=donate_x)
        return out2d.reshape(orig_shape)

    # Ragged element count (n not a multiple of 128, rare for NCHW activations):
    # run the divisible prefix through the kernel and multiply the <128-element
    # tail with plain XLA -- avoids the old jnp.pad + [:n] slice double pass.
    lane = 128
    prefix_n = (n // lane) * lane
    if prefix_n == 0:
        y = (flat.astype(jnp.float32) * factor_f32).astype(dtype)
        return y.reshape(orig_shape)
    head = _mul_pallas_2d(flat[:prefix_n].reshape(prefix_n // lane, lane),
                          factor_f32).reshape(-1)
    tail = (flat[prefix_n:].astype(jnp.float32) * factor_f32).astype(dtype)
    return jnp.concatenate([head, tail]).reshape(orig_shape)


if __name__ == "__main__":
    key = jax.random.PRNGKey(0)
    # Deterministic parameter init matching nn.Parameter(torch.ones(1) * factor), factor=2
    factor = jnp.ones((1,), dtype=jnp.float32) * 2.0

    x = jax.random.normal(key, (2, 4, 16, 16), dtype=jnp.float32)

    y = multiplication_forward(x, factor)
    jax.block_until_ready(y)

    expected = x * factor[0]
    assert y.shape == x.shape and y.dtype == x.dtype
    assert jnp.allclose(y, expected, atol=1e-6), "mismatch vs reference"
    print("KERNEL_OK")
</pallas_src>

<mosaic_0001>
module attributes {stable_mosaic.version = 11 : i64} {
  func.func @_mul_kernel(%arg0: i32, %arg1: memref<1x1xf32, #tpu.memory_space<smem>>, %arg2: memref<8x256xf32, #tpu.memory_space<vmem>>, %arg3: memref<8x256xf32, #tpu.memory_space<vmem>>) attributes {dimension_semantics = [#tpu.dimension_semantics<parallel>], iteration_bounds = array<i64: 1>, scalar_prefetch = 0 : i64, scratch_operands = 0 : i64, tpu.core_type = #tpu.core_type<tc>, window_params = [{transform_indices = @transform_0, window_bounds = array<i64: 1, 1>}, {transform_indices = @transform_1, window_bounds = array<i64: 8, 256>}, {transform_indices = @transform_2, window_bounds = array<i64: 8, 256>}]} {
    %c0 = arith.constant 0 : index
    %c0_0 = arith.constant 0 : index
    %0 = memref.load %arg1[%c0, %c0_0] : memref<1x1xf32, #tpu.memory_space<smem>>
    %c0_1 = arith.constant 0 : index
    %c0_2 = arith.constant 0 : index
    %1 = vector.load %arg2[%c0_1, %c0_2] : memref<8x256xf32, #tpu.memory_space<vmem>>, vector<8x256xf32>
    %2 = vector.broadcast %0 : f32 to vector<8x256xf32>
    %3 = arith.mulf %1, %2 : vector<8x256xf32>
    %c0_3 = arith.constant 0 : index
    %c0_4 = arith.constant 0 : index
    %4 = vector.load %arg3[%c0_3, %c0_4] : memref<8x256xf32, #tpu.memory_space<vmem>>, vector<8x256xf32>
    tpu.vector_store %arg3[%c0_3, %c0_4], %3 {strides = array<i32>} : memref<8x256xf32, #tpu.memory_space<vmem>>, vector<8x256xf32>,
    return
  }
  func.func @transform_0(%arg0: i32) -> (i32, i32) {
    %c0_i32 = arith.constant 0 : i32
    %c0_i32_0 = arith.constant 0 : i32
    %c0_i32_1 = arith.constant 0 : i32
    return %c0_i32, %c0_i32_0 : i32, i32
  }
  func.func @transform_1(%arg0: i32) -> (i32, i32) {
    %c0_i32 = arith.constant 0 : i32
    %c0_i32_0 = arith.constant 0 : i32
    return %arg0, %c0_i32 : i32, i32
  }
  func.func @transform_2(%arg0: i32) -> (i32, i32) {
    %c0_i32 = arith.constant 0 : i32
    %c0_i32_0 = arith.constant 0 : i32
    return %arg0, %c0_i32 : i32, i32
  }
}

</mosaic_0001>

<llo_original>
// kernel: tpu_custom_call.1
$region0: #{tpu_custom_call.1}
  #allocation0 [shape = 'u32[]', space=smem, size = 0x4, offset = 0x4, fixed_abs, tag = 'smem constant byte address 0x4 - core index']
  #allocation1 [shape = 'u32[72,128]{1,0:T(1,128)}', space=vmem, size = 0x9000, scoped, tag = 'internal scratch']
  #allocation2 [shape = 'f32[1,1]{1,0:T(1,128)S(6)}', space=smem, size = 0x200, scoped, tag = 'scoped memory for tpu_custom_call.1']
  %s0 = inlined_call_operand.<no memory space> [shape: f32[1,1], index: 0, kind: input, shape index: {}]
  %s1 = inlined_call_operand.hbm [shape: f32[8,256], index: 1, kind: input, shape index: {}]
  %s2 = inlined_call_operand.hbm [shape: f32[8,256], index: 2, kind: output, shape index: {}]
  %s3 = sld [smem:[#allocation0]]
  $region22: #{tpu_custom_call.1} parent=0
    _
  %s5 = ssub.s32 1, %s3
  %s6 = scalar_select 0, %s5, %s3
  %7 = sst [smem:[#allocation2]] %s0
  $region1: #{tpu_custom_call.1} parent=0
    #allocation3 [shape = 'u8[8192]{0}', space=vmem, size = 0x2000, scoped, tag = 'input window, operand 1, single buffered']
    #allocation4 [shape = 's32[1]{0}', space=sflag, size = 0x4, scoped, tag = 'scoped memory for tpu_custom_call.1']
    #allocation5 [shape = 's32[1]{0}', space=sflag, size = 0x4, scoped, tag = 'scoped memory for tpu_custom_call.1']
    #allocation6 [shape = 'u8[8192]{0}', space=vmem, size = 0x2000, scoped, tag = 'output window, operand 0, single buffered']
    %8 = vsyncpa [#allocation4], 0
    %9 = vsyncpa [#allocation5], 0
    // Predicated region
    $region2: #{tpu_custom_call.1} parent=1 // pred_check
      _
    $region3: #{tpu_custom_call.1} parent=1 // pred_check_branch
      %11 = sbr.rel (0) target = $region5
    $region4: #{tpu_custom_call.1} parent=1 // pred_region
      _
    $region5: #{tpu_custom_call.1} parent=1 // pred_fallthru
      _
    // Predicated region
    $region6: #{tpu_custom_call.1} parent=1 // pred_check
      _
    $region7: #{tpu_custom_call.1} parent=1 // pred_check_branch
      %13 = sbr.rel (0) target = $region9
    $region8: #{tpu_custom_call.1} parent=1 // pred_region
      %15 = vsyncadd [#allocation4], 0
      %s17 = sshll.u32 %s1, 4
      %s18 = int_to_ptr.hbm [resolvable:$true] %s17
      %s19 = sshll.u32 [#allocation3], 4
      %s20 = int_to_ptr.vmem [resolvable:$true] %s19
      %22 = dma.hbm_to_vmem [thread:$0]  %s18, 256, %s20, [#allocation4]
    $region9: #{tpu_custom_call.1} parent=1 // pred_fallthru
      _
    // Predicated region
    $region10: #{tpu_custom_call.1} parent=1 // pred_check
      _
    $region11: #{tpu_custom_call.1} parent=1 // pred_check_branch
      %24 = sbr.rel (0) target = $region13
    $region12: #{tpu_custom_call.1} parent=1 // pred_region
      %26 = dma.done [#allocation4], 256
    $region13: #{tpu_custom_call.1} parent=1 // pred_fallthru
      _
    %s27 = sld [smem:[#allocation2]]
    %v28 = vld [vmem:[#allocation3] sm:$0xff]
    %v29 = vld [vmem:[#allocation3 + $0x8] sm:$0xff]
    %v30 = vstv %s27
    %v31 = vmul.f32 %v28, %v30
    %v32 = vmul.f32 %v29, %v30
    %33 = vst [vmem:[#allocation6] sm:$0xff] %v31
    %34 = vst [vmem:[#allocation6 + $0x8] sm:$0xff] %v32
    // Predicated region
    $region14: #{tpu_custom_call.1} parent=1 // pred_check
      _
    $region15: #{tpu_custom_call.1} parent=1 // pred_check_branch
      %36 = sbr.rel (0) target = $region17
    $region16: #{tpu_custom_call.1} parent=1 // pred_region
      %38 = vsyncadd [#allocation5], 0
      %s40 = sshll.u32 [#allocation6], 4
      %s41 = int_to_ptr.vmem [resolvable:$true] %s40
      %s42 = sshll.u32 %s2, 4
      %s43 = int_to_ptr.hbm [resolvable:$true] %s42
      %45 = dma.vmem_to_hbm [thread:$0]  %s41, 256, %s43, [#allocation5]
    $region17: #{tpu_custom_call.1} parent=1 // pred_fallthru
      _
    // Predicated region
    $region18: #{tpu_custom_call.1} parent=1 // pred_check
      _
    $region19: #{tpu_custom_call.1} parent=1 // pred_check_branch
      %47 = sbr.rel (0) target = $region21
    $region20: #{tpu_custom_call.1} parent=1 // pred_region
      %49 = dma.done [#allocation5], 256
    $region21: #{tpu_custom_call.1} parent=1 // pred_fallthru
      _
    %50 = vsyncpa [#allocation4], 1
    %51 = vsyncpa [#allocation5], 1

</llo_original>
